<compile_context>
chip_gen: v6e
topology: v6e:2x2x1
jax: 0.10.0
libtpu: 0.0.40
codegen_flags: <defaults>
</compile_context>

<pallas_src>
import math
import jax
import jax.numpy as jnp
from jax.experimental import pallas as pl
from jax.experimental.pallas import tpu as pltpu

_INV_SQRT2 = 0.7071067811865476
_LANE = 128
_SUBLANE = 8


def _gelu_exact_f32(x):
    # PyTorch nn.GELU() default: exact erf-based GELU, computed in f32.
    xf = x.astype(jnp.float32)
    return 0.5 * xf * (1.0 + jax.lax.erf(xf * _INV_SQRT2))


def mix_patchify_kernel(x_ref, w1_ref, b1_ref, w2_ref, b2_ref, o_ref):
    # x_ref  : (1, TN, P*C)   patch-packed input rows
    # w1_ref : (P*C, P*H)     block-diagonal stage-1 (1x1 conv) weight
    # b1_ref : (1, P*H)       stage-1 bias, tiled per timestep-in-patch (f32)
    # w2_ref : (P*H, E_pad)   flattened stage-2 (patch conv) weight
    # b2_ref : (1, E_pad)     stage-2 bias (f32, zero-padded)
    # o_ref  : (1, TN, E_pad)
    x = x_ref[0]                                                   # (TN, P*C)

    # --- stage 1: 1x1 conv (channel mix) + exact GELU, f32 accumulation ------
    h = jnp.dot(x, w1_ref[...], preferred_element_type=jnp.float32)
    h = _gelu_exact_f32(h + b1_ref[0].astype(jnp.float32))         # (TN, P*H)

    # --- stage 2: patch conv (kernel = stride = P) + exact GELU --------------
    acc = jnp.dot(h.astype(w2_ref.dtype), w2_ref[...],
                  preferred_element_type=jnp.float32)              # (TN, E_pad)
    acc = acc + b2_ref[0].astype(jnp.float32)
    o_ref[0] = _gelu_exact_f32(acc).astype(o_ref.dtype)


def _round_up(x, m):
    return -(-x // m) * m


def _padded_tile_bytes(rows, cols, itemsize):
    # (8, 128)-padded VMEM footprint of a 2-D tile.
    return (_round_up(max(rows, 1), _SUBLANE)
            * _round_up(max(cols, 1), _LANE) * itemsize)


def _vmem_bytes(tile_n, pc, ph, e_pad, itemsize):
    x_t = _padded_tile_bytes(tile_n, pc, itemsize)
    w1_t = _padded_tile_bytes(pc, ph, itemsize)
    w2_t = _padded_tile_bytes(ph, e_pad, itemsize)
    b_t = (_padded_tile_bytes(1, ph, 4) + _padded_tile_bytes(1, e_pad, 4))
    o_t = _padded_tile_bytes(tile_n, e_pad, itemsize)
    h_t = _padded_tile_bytes(tile_n, ph, 4)          # live f32 intermediate
    # BlockSpec double-buffers inputs/outputs; ~2x headroom on f32 temporaries.
    return 2 * (x_t + w1_t + w2_t + b_t + o_t) + 2 * h_t


def _choose_tile_n(n_patches, pc, ph, e_pad, itemsize, budget_bytes=24 * 2**20):
    """Token-tile size: multiple of 8 sublanes, under a conservative VMEM budget
    (fits v7x's 64 MiB / the 32 MiB default scoped limit with headroom)."""
    tile = min(n_patches, 2048)
    tile = max(_SUBLANE, (tile // _SUBLANE) * _SUBLANE)
    while tile > _SUBLANE and _vmem_bytes(tile, pc, ph, e_pad, itemsize) > budget_bytes:
        tile = max(_SUBLANE, (tile // 2 // _SUBLANE) * _SUBLANE)
    if tile >= n_patches:
        return n_patches          # single tile: full-dim block is always legal
    return tile


def mix_patchify(x_blc, w1, b1, w2, b2, patch_size):
    """MixPatchify forward, channels-last layout.

    x_blc: (B, L, C_in)     -- torch's (B, C, L) transposed to channels-last
    w1:    (E//2, C_in, 1)  -- torch Conv1d(channel_mix) weight
    b1:    (E//2,)
    w2:    (E, E//2, P)     -- torch Conv1d(patch conv) weight
    b2:    (E,)
    returns (B, L // P, E)  -- patches, channels-last
    """
    B, L, C = x_blc.shape
    H = w1.shape[0]
    E = w2.shape[0]
    P = patch_size
    assert L % P == 0, "sequence length must be a multiple of patch_size"
    n_patches = L // P
    PC, PH = P * C, P * H
    E_pad = _round_up(E, _LANE)

    dtype = x_blc.dtype
    itemsize = jnp.dtype(dtype).itemsize

    # ---- glue: parameter / input re-layout (plain JAX, outside the kernel) ----
    # Pack P consecutive timesteps into one row so both convs are 2-D matmuls.
    x_pk = x_blc.reshape(B, n_patches, PC)

    w1_mat = jnp.transpose(w1[:, :, 0], (1, 0)).astype(dtype)       # (C, H)
    # Block-diagonal stage-1 weight: w1_blk[k*C + c, k*H + j] = w1_mat[c, j].
    w1_blk = (jnp.eye(P, dtype=dtype)[:, None, :, None]
              * w1_mat[None, :, None, :]).reshape(PC, PH)
    b1_t = jnp.tile(b1.astype(jnp.float32), (P,)).reshape(1, PH)

    # Stage-2 weight flattened so row (k*H + j) holds torch_w2[:, j, k];
    # padded to lane-dense E (multiple of 128) for unmasked stores.
    w2_flat = jnp.transpose(w2, (2, 1, 0)).reshape(PH, E).astype(dtype)
    w2_flat = jnp.pad(w2_flat, ((0, 0), (0, E_pad - E)))
    b2_p = jnp.pad(b2.astype(jnp.float32), (0, E_pad - E)).reshape(1, E_pad)

    # ---- tiling / VMEM budget ------------------------------------------------
    tile_n = _choose_tile_n(n_patches, PC, PH, E_pad, itemsize)
    n_tiles = pl.cdiv(n_patches, tile_n)
    vmem_limit = int(min(64 * 2**20,
                         max(32 * 2**20,
                             2 * _vmem_bytes(tile_n, PC, PH, E_pad, itemsize))))

    out = pl.pallas_call(
        mix_patchify_kernel,
        out_shape=jax.ShapeDtypeStruct((B, n_patches, E_pad), dtype),
        grid_spec=pltpu.PrefetchScalarGridSpec(
            num_scalar_prefetch=0,
            grid=(B, n_tiles),
            in_specs=[
                pl.BlockSpec((1, tile_n, PC), lambda b, t: (b, t, 0)),
                pl.BlockSpec((PC, PH), lambda b, t: (0, 0)),
                pl.BlockSpec((1, PH), lambda b, t: (0, 0)),
                pl.BlockSpec((PH, E_pad), lambda b, t: (0, 0)),
                pl.BlockSpec((1, E_pad), lambda b, t: (0, 0)),
            ],
            out_specs=pl.BlockSpec((1, tile_n, E_pad), lambda b, t: (b, t, 0)),
        ),
        compiler_params=pltpu.CompilerParams(
            dimension_semantics=("parallel", "parallel"),
            vmem_limit_bytes=vmem_limit,
        ),
    )(x_pk, w1_blk, b1_t, w2_flat, b2_p)

    return out[..., :E] if E_pad != E else out


def mix_patchify_ncl(x_ncl, w1, b1, w2, b2, patch_size):
    """Exact torch layout: x (B, C, L) -> (B, E, L // P)."""
    x_blc = jnp.transpose(x_ncl, (0, 2, 1))
    out_ble = mix_patchify(x_blc, w1, b1, w2, b2, patch_size)
    return jnp.transpose(out_ble, (0, 2, 1))


def reference_ncl(x_ncl, w1, b1, w2, b2, patch_size):
    """Pure-JAX reference replicating torch semantics, torch (B, C, L) layout."""
    x_blc = jnp.transpose(x_ncl, (0, 2, 1))
    B, L, C = x_blc.shape
    H = w1.shape[0]
    P = patch_size
    h = _gelu_exact_f32(jnp.einsum("blc,hc->blh", x_blc, w1[:, :, 0]) + b1)
    h3 = h.reshape(B, L // P, P, H)
    out = jnp.einsum("bpkh,ehk->bpe", h3, w2) + b2
    return jnp.transpose(_gelu_exact_f32(out), (0, 2, 1))   # (B, E, L//P)


if __name__ == "__main__":
    # Small shapes consistent with the module.
    B, C_in, L = 2, 4, 16
    embed_dimension, patch_size = 32, 4
    H = embed_dimension // 2

    key = jax.random.PRNGKey(0)
    k_x, k_w1, k_b1, k_w2, k_b2 = jax.random.split(key, 5)

    # Deterministic torch-Conv1d-shaped parameters (kaiming-uniform-like bounds).
    bound1 = 1.0 / math.sqrt(C_in * 1)
    bound2 = 1.0 / math.sqrt(H * patch_size)
    w1 = jax.random.uniform(k_w1, (H, C_in, 1), jnp.float32, -bound1, bound1)
    b1 = jax.random.uniform(k_b1, (H,), jnp.float32, -bound1, bound1)
    w2 = jax.random.uniform(k_w2, (embed_dimension, H, patch_size), jnp.float32,
                            -bound2, bound2)
    b2 = jax.random.uniform(k_b2, (embed_dimension,), jnp.float32, -bound2, bound2)

    # Input in torch layout (B, C, L).
    x_ncl = jax.random.normal(k_x, (B, C_in, L), jnp.float32)

    out = mix_patchify_ncl(x_ncl, w1, b1, w2, b2, patch_size)
    out = jax.block_until_ready(out)

    ref = reference_ncl(x_ncl, w1, b1, w2, b2, patch_size)
    assert out.shape == (B, embed_dimension, L // patch_size), out.shape
    assert jnp.allclose(out, ref, rtol=1e-5, atol=1e-5), \
        float(jnp.max(jnp.abs(out - ref)))

    print("KERNEL_OK")
</pallas_src>

<mosaic_0001>
module attributes {stable_mosaic.version = 11 : i64} {
  func.func @mix_patchify_kernel(%arg0: i32, %arg1: i32, %arg2: memref<1x4x16xf32, #tpu.memory_space<vmem>>, %arg3: memref<16x64xf32, #tpu.memory_space<vmem>>, %arg4: memref<1x64xf32, #tpu.memory_space<vmem>>, %arg5: memref<64x128xf32, #tpu.memory_space<vmem>>, %arg6: memref<1x128xf32, #tpu.memory_space<vmem>>, %arg7: memref<1x4x128xf32, #tpu.memory_space<vmem>>) attributes {dimension_semantics = [#tpu.dimension_semantics<parallel>, #tpu.dimension_semantics<parallel>], iteration_bounds = array<i64: 2, 1>, scalar_prefetch = 0 : i64, scratch_operands = 0 : i64, tpu.core_type = #tpu.core_type<tc>, window_params = [{transform_indices = @transform_0, window_bounds = array<i64: 1, 4, 16>}, {pipeline_mode = #tpu.pipeline_mode<synchronous>, transform_indices = @transform_1, window_bounds = array<i64: 16, 64>}, {pipeline_mode = #tpu.pipeline_mode<synchronous>, transform_indices = @transform_2, window_bounds = array<i64: 1, 64>}, {pipeline_mode = #tpu.pipeline_mode<synchronous>, transform_indices = @transform_3, window_bounds = array<i64: 64, 128>}, {pipeline_mode = #tpu.pipeline_mode<synchronous>, transform_indices = @transform_4, window_bounds = array<i64: 1, 128>}, {transform_indices = @transform_5, window_bounds = array<i64: 1, 4, 128>}]} {
    %c0 = arith.constant 0 : index
    %c0_0 = arith.constant 0 : index
    %c0_1 = arith.constant 0 : index
    %0 = vector.load %arg2[%c0, %c0_0, %c0_1] : memref<1x4x16xf32, #tpu.memory_space<vmem>>, vector<1x4x16xf32>
    %1 = vector.shape_cast %0 : vector<1x4x16xf32> to vector<4x16xf32>
    %c0_2 = arith.constant 0 : index
    %c0_3 = arith.constant 0 : index
    %2 = vector.load %arg3[%c0_2, %c0_3] : memref<16x64xf32, #tpu.memory_space<vmem>>, vector<16x64xf32>
    %cst = arith.constant dense<0.000000e+00> : vector<4x64xf32>
    %3 = tpu.matmul %1, %2, %cst {dimension_numbers = #tpu.dot_dimension_numbers<[1], [0], [0], [1], [0, 0, 1, 1], [], []>} : vector<4x16xf32>, vector<16x64xf32>, vector<4x64xf32> -> vector<4x64xf32>
    %c0_4 = arith.constant 0 : index
    %c0_5 = arith.constant 0 : index
    %4 = vector.load %arg4[%c0_4, %c0_5] : memref<1x64xf32, #tpu.memory_space<vmem>>, vector<1x64xf32>
    %5 = vector.shape_cast %4 : vector<1x64xf32> to vector<64xf32>
    %6 = vector.shape_cast %5 : vector<64xf32> to vector<1x64xf32>
    %7 = vector.broadcast %6 : vector<1x64xf32> to vector<4x64xf32>
    %8 = arith.addf %3, %7 : vector<4x64xf32>
    %cst_6 = arith.constant 5.000000e-01 : f32
    %9 = vector.broadcast %cst_6 : f32 to vector<4x64xf32>
    %10 = arith.mulf %9, %8 : vector<4x64xf32>
    %cst_7 = arith.constant 0.707106769 : f32
    %11 = vector.broadcast %cst_7 : f32 to vector<4x64xf32>
    %12 = arith.mulf %8, %11 : vector<4x64xf32>
    %13 = math.erf %12 : vector<4x64xf32>
    %cst_8 = arith.constant 1.000000e+00 : f32
    %14 = vector.broadcast %cst_8 : f32 to vector<4x64xf32>
    %15 = arith.addf %14, %13 : vector<4x64xf32>
    %16 = arith.mulf %10, %15 : vector<4x64xf32>
    %c0_9 = arith.constant 0 : index
    %c0_10 = arith.constant 0 : index
    %17 = vector.load %arg5[%c0_9, %c0_10] : memref<64x128xf32, #tpu.memory_space<vmem>>, vector<64x128xf32>
    %cst_11 = arith.constant dense<0.000000e+00> : vector<4x128xf32>
    %18 = tpu.matmul %16, %17, %cst_11 {dimension_numbers = #tpu.dot_dimension_numbers<[1], [0], [0], [1], [0, 0, 1, 1], [], []>} : vector<4x64xf32>, vector<64x128xf32>, vector<4x128xf32> -> vector<4x128xf32>
    %c0_12 = arith.constant 0 : index
    %c0_13 = arith.constant 0 : index
    %19 = vector.load %arg6[%c0_12, %c0_13] : memref<1x128xf32, #tpu.memory_space<vmem>>, vector<1x128xf32>
    %20 = vector.shape_cast %19 : vector<1x128xf32> to vector<128xf32>
    %21 = vector.shape_cast %20 : vector<128xf32> to vector<1x128xf32>
    %22 = vector.broadcast %21 : vector<1x128xf32> to vector<4x128xf32>
    %23 = arith.addf %18, %22 : vector<4x128xf32>
    %cst_14 = arith.constant 5.000000e-01 : f32
    %24 = vector.broadcast %cst_14 : f32 to vector<4x128xf32>
    %25 = arith.mulf %24, %23 : vector<4x128xf32>
    %cst_15 = arith.constant 0.707106769 : f32
    %26 = vector.broadcast %cst_15 : f32 to vector<4x128xf32>
    %27 = arith.mulf %23, %26 : vector<4x128xf32>
    %28 = math.erf %27 : vector<4x128xf32>
    %cst_16 = arith.constant 1.000000e+00 : f32
    %29 = vector.broadcast %cst_16 : f32 to vector<4x128xf32>
    %30 = arith.addf %29, %28 : vector<4x128xf32>
    %31 = arith.mulf %25, %30 : vector<4x128xf32>
    %c0_17 = arith.constant 0 : index
    %c0_18 = arith.constant 0 : index
    %c0_19 = arith.constant 0 : index
    %32 = vector.load %arg7[%c0_17, %c0_18, %c0_19] : memref<1x4x128xf32, #tpu.memory_space<vmem>>, vector<1x4x128xf32>
    %33 = vector.shape_cast %32 : vector<1x4x128xf32> to vector<4x128xf32>
    %34 = vector.shape_cast %31 : vector<4x128xf32> to vector<1x4x128xf32>
    tpu.vector_store %arg7[%c0_17, %c0_18, %c0_19], %34 {strides = array<i32>} : memref<1x4x128xf32, #tpu.memory_space<vmem>>, vector<1x4x128xf32>,
    return
  }
  func.func @transform_0(%arg0: i32, %arg1: i32) -> (i32, i32, i32) {
    %c0_i32 = arith.constant 0 : i32
    %c0_i32_0 = arith.constant 0 : i32
    return %arg0, %arg1, %c0_i32 : i32, i32, i32
  }
  func.func @transform_1(%arg0: i32, %arg1: i32) -> (i32, i32) {
    %c0_i32 = arith.constant 0 : i32
    %c0_i32_0 = arith.constant 0 : i32
    %c0_i32_1 = arith.constant 0 : i32
    return %c0_i32, %c0_i32_0 : i32, i32
  }
  func.func @transform_2(%arg0: i32, %arg1: i32) -> (i32, i32) {
    %c0_i32 = arith.constant 0 : i32
    %c0_i32_0 = arith.constant 0 : i32
    %c0_i32_1 = arith.constant 0 : i32
    return %c0_i32, %c0_i32_0 : i32, i32
  }
  func.func @transform_3(%arg0: i32, %arg1: i32) -> (i32, i32) {
    %c0_i32 = arith.constant 0 : i32
    %c0_i32_0 = arith.constant 0 : i32
    %c0_i32_1 = arith.constant 0 : i32
    return %c0_i32, %c0_i32_0 : i32, i32
  }
  func.func @transform_4(%arg0: i32, %arg1: i32) -> (i32, i32) {
    %c0_i32 = arith.constant 0 : i32
    %c0_i32_0 = arith.constant 0 : i32
    %c0_i32_1 = arith.constant 0 : i32
    return %c0_i32, %c0_i32_0 : i32, i32
  }
  func.func @transform_5(%arg0: i32, %arg1: i32) -> (i32, i32, i32) {
    %c0_i32 = arith.constant 0 : i32
    %c0_i32_0 = arith.constant 0 : i32
    return %arg0, %arg1, %c0_i32 : i32, i32, i32
  }
}

</mosaic_0001>

<llo_original>
// kernel: tpu_custom_call.1
$region0: #{tpu_custom_call.1}
  #allocation0 [shape = 'u32[]', space=smem, size = 0x4, offset = 0x4, fixed_abs, tag = 'smem constant byte address 0x4 - core index']
  #allocation1 [shape = 'u32[144,128]{1,0:T(1,128)}', space=vmem, size = 0x12000, scoped, tag = 'internal scratch']
  %s0 = inlined_call_operand.hbm [shape: f32[2,4,16], index: 0, kind: input, shape index: {}]
  %s1 = inlined_call_operand.hbm [shape: f32[16,64], index: 1, kind: input, shape index: {}]
  %s2 = inlined_call_operand.vmem [shape: f32[1,64], index: 2, kind: input, shape index: {}]
  %s3 = inlined_call_operand.hbm [shape: f32[64,128], index: 3, kind: input, shape index: {}]
  %s4 = inlined_call_operand.vmem [shape: f32[1,128], index: 4, kind: input, shape index: {}]
  %s5 = inlined_call_operand.hbm [shape: f32[2,4,128], index: 5, kind: output, shape index: {}]
  %s6 = sld [smem:[#allocation0]]
  $region65: #{tpu_custom_call.1} parent=0
    _
  %s8 = ssub.s32 1, %s6
  %s9 = scalar_select 0, %s8, %s6
  $region1: #{tpu_custom_call.1} parent=0
    #allocation2 [shape = 'u8[4096]{0}', space=vmem, size = 0x1000, scoped, tag = 'input window, operand 0']
    #allocation3 [shape = 's32[2]{0}', space=sflag, size = 0x8, scoped, tag = 'scoped memory for tpu_custom_call.1']
    #allocation4 [shape = 's32[2]{0}', space=sflag, size = 0x8, scoped, tag = 'scoped memory for tpu_custom_call.1']
    #allocation5 [shape = 'u8[8192]{0}', space=vmem, size = 0x2000, scoped, tag = 'input window, operand 1, single buffered']
    #allocation6 [shape = 's32[1]{0}', space=sflag, size = 0x4, scoped, tag = 'scoped memory for tpu_custom_call.1']
    #allocation7 [shape = 'u8[32768]{0}', space=vmem, size = 0x8000, scoped, tag = 'input window, operand 3, single buffered']
    #allocation8 [shape = 'u8[4096]{0}', space=vmem, size = 0x1000, scoped, tag = 'output window, operand 0']
    %10 = vsyncpa [#allocation3], 0
    %s11 = scalar_lea.sflag [#allocation3], 1
    %12 = vsyncpa %s11, 0
    %13 = vsyncpa [#allocation6], 0
    %14 = vsyncpa [#allocation4], 0
    %s15 = scalar_lea.sflag [#allocation4], 1
    %16 = vsyncpa %s15, 0
    loop: start=0, step=1, limit=4
    $region2: #{tpu_custom_call.1} parent=1 // loop_pre_header
      _
    $region3: #{tpu_custom_call.1} parent=1 // loop_header
      %s18 = sphi 0, %s22
      %p19 = scmp.ge.s32.totalorder %s18, 4
      %s25 = sphi 0, %s37
      %s26 = sphi 0, %s33
      %s27 = sphi 0, %s25
      %s28 = sphi 0, %s26
      %s29 = sphi 0, %s27
      %s30 = sphi 0, %s28
      %s42 = sphi 0, %s44
      %s45 = sphi 0, %s42
      %s46 = sphi 0, %s45
      %s62 = sphi 0, %s46
      %s66 = sphi 0, %s66
      %s68 = sphi 0, %s66
      %s69 = sphi 0, %s68
      %s83 = sphi 0, %s69
      %s87 = sphi 0, %s87
      %s89 = sphi 0, %s87
      %s90 = sphi 0, %s89
      %s104 = sphi 0, %s90
      %s108 = sphi 0, %s108
      %s110 = sphi 0, %s108
      %s111 = sphi 0, %s110
      %s125 = sphi 0, %s111
      %s129 = sphi 0, %s129
      %s131 = sphi 0, %s129
      %s132 = sphi 0, %s131
      %s146 = sphi 0, %s132
      %s154 = sphi 0, %s156
      %s157 = sphi 0, %s154
      %s158 = sphi 0, %s157
      %s174 = sphi 0, %s158
    $region4: #{tpu_custom_call.1} parent=1 // loop_header_branch
      %21 = sbr.rel (%p19) target = $region8
    $region5: #{tpu_custom_call.1} parent=1 // loop_body
      %s23 = ssub.s32 %s18, 1
      %s24 = ssub.s32 %s18, 2
      %s31 = sadd.s32 1, %s26
      %p32 = scmp.ge.s32.totalorder %s31, 1
      %s33 = scalar_select %p32, 0, %s31
      %s34 = sadd.s32 1, %s25
      %s35 = scalar_select %p32, %s34, %s25
      %p36 = scmp.ge.s32.totalorder %s35, 2
      %s37 = scalar_select %p36, 0, %s35
      %s38 = ssub.s32 %s25, %s37
      %s39 = ssub.s32 %s26, %s33
      %s40 = sor.u32 %s38, %s39
      %p41 = scmp.eq.s32.totalorder %s40, 0
      %s43 = sadd.s32 %s42, 1
      %s44 = scalar_select %p41, %s42, %s43
      %p47 = pneg %p41
      %p48 = scmp.eq.s32.totalorder %s18, 1
      %p49 = por %p47, %p48
      %p50 = scmp.ne.s32.totalorder %s42, %s45
      %p51 = scmp.eq.s32.totalorder %s18, 0
      %p52 = por %p50, %p51
      %p53 = scmp.ne.s32.totalorder %s42, %s45
      %p54 = scmp.eq.s32.totalorder %s23, 1
      %p55 = por %p53, %p54
      %p56 = scmp.ne.s32.totalorder %s45, %s46
      %p57 = scmp.eq.s32.totalorder %s23, 0
      %p58 = por %p56, %p57
      %p59 = scmp.ne.s32.totalorder %s45, %s46
      %p60 = scmp.eq.s32.totalorder %s24, 1
      %p61 = por %p59, %p60
      %p63 = scmp.ne.s32.totalorder %s46, %s62
      %p64 = scmp.eq.s32.totalorder %s24, 0
      %p65 = por %p63, %p64
      %s67 = sadd.s32 %s66, 1
      %p70 = scmp.eq.s32.totalorder %s18, 1
      %p71 = scmp.ne.s32.totalorder %s66, %s68
      %p72 = scmp.eq.s32.totalorder %s18, 0
      %p73 = por %p71, %p72
      %p74 = scmp.ne.s32.totalorder %s66, %s68
      %p75 = scmp.eq.s32.totalorder %s23, 1
      %p76 = por %p74, %p75
      %p77 = scmp.ne.s32.totalorder %s68, %s69
      %p78 = scmp.eq.s32.totalorder %s23, 0
      %p79 = por %p77, %p78
      %p80 = scmp.ne.s32.totalorder %s68, %s69
      %p81 = scmp.eq.s32.totalorder %s24, 1
      %p82 = por %p80, %p81
      %p84 = scmp.ne.s32.totalorder %s69, %s83
      %p85 = scmp.eq.s32.totalorder %s24, 0
      %p86 = por %p84, %p85
      %s88 = sadd.s32 %s87, 1
      %p91 = scmp.eq.s32.totalorder %s18, 1
      %p92 = scmp.ne.s32.totalorder %s87, %s89
      %p93 = scmp.eq.s32.totalorder %s18, 0
      %p94 = por %p92, %p93
      %p95 = scmp.ne.s32.totalorder %s87, %s89
      %p96 = scmp.eq.s32.totalorder %s23, 1
      %p97 = por %p95, %p96
      %p98 = scmp.ne.s32.totalorder %s89, %s90
      %p99 = scmp.eq.s32.totalorder %s23, 0
      %p100 = por %p98, %p99
      %p101 = scmp.ne.s32.totalorder %s89, %s90
      %p102 = scmp.eq.s32.totalorder %s24, 1
      %p103 = por %p101, %p102
      %p105 = scmp.ne.s32.totalorder %s90, %s104
      %p106 = scmp.eq.s32.totalorder %s24, 0
      %p107 = por %p105, %p106
      %s109 = sadd.s32 %s108, 1
      %p112 = scmp.eq.s32.totalorder %s18, 1
      %p113 = scmp.ne.s32.totalorder %s108, %s110
      %p114 = scmp.eq.s32.totalorder %s18, 0
      %p115 = por %p113, %p114
      %p116 = scmp.ne.s32.totalorder %s108, %s110
      %p117 = scmp.eq.s32.totalorder %s23, 1
      %p118 = por %p116, %p117
      %p119 = scmp.ne.s32.totalorder %s110, %s111
      %p120 = scmp.eq.s32.totalorder %s23, 0
      %p121 = por %p119, %p120
      %p122 = scmp.ne.s32.totalorder %s110, %s111
      %p123 = scmp.eq.s32.totalorder %s24, 1
      %p124 = por %p122, %p123
      %p126 = scmp.ne.s32.totalorder %s111, %s125
      %p127 = scmp.eq.s32.totalorder %s24, 0
      %p128 = por %p126, %p127
      %s130 = sadd.s32 %s129, 1
      %p133 = scmp.eq.s32.totalorder %s18, 1
      %p134 = scmp.ne.s32.totalorder %s129, %s131
      %p135 = scmp.eq.s32.totalorder %s18, 0
      %p136 = por %p134, %p135
      %p137 = scmp.ne.s32.totalorder %s129, %s131
      %p138 = scmp.eq.s32.totalorder %s23, 1
      %p139 = por %p137, %p138
      %p140 = scmp.ne.s32.totalorder %s131, %s132
      %p141 = scmp.eq.s32.totalorder %s23, 0
      %p142 = por %p140, %p141
      %p143 = scmp.ne.s32.totalorder %s131, %s132
      %p144 = scmp.eq.s32.totalorder %s24, 1
      %p145 = por %p143, %p144
      %p147 = scmp.ne.s32.totalorder %s132, %s146
      %p148 = scmp.eq.s32.totalorder %s24, 0
      %p149 = por %p147, %p148
      %s150 = ssub.s32 %s25, %s37
      %s151 = ssub.s32 %s26, %s33
      %s152 = sor.u32 %s150, %s151
      %p153 = scmp.eq.s32.totalorder %s152, 0
      %s155 = sadd.s32 %s154, 1
      %s156 = scalar_select %p153, %s154, %s155
      %p159 = pneg %p153
      %p160 = scmp.eq.s32.totalorder %s18, 1
      %p161 = por %p159, %p160
      %p162 = scmp.ne.s32.totalorder %s154, %s157
      %p163 = scmp.eq.s32.totalorder %s18, 0
      %p164 = por %p162, %p163
      %p165 = scmp.ne.s32.totalorder %s154, %s157
      %p166 = scmp.eq.s32.totalorder %s23, 1
      %p167 = por %p165, %p166
      %p168 = scmp.ne.s32.totalorder %s157, %s158
      %p169 = scmp.eq.s32.totalorder %s23, 0
      %p170 = por %p168, %p169
      %p171 = scmp.ne.s32.totalorder %s157, %s158
      %p172 = scmp.eq.s32.totalorder %s24, 1
      %p173 = por %p171, %p172
      %p175 = scmp.ne.s32.totalorder %s158, %s174
      %p176 = scmp.eq.s32.totalorder %s24, 0
      %p177 = por %p175, %p176
      %p178 = scmp.le.s32.totalorder 1, %s18
      %p179 = scmp.lt.s32.totalorder %s18, 3
      %p180 = pnand %p178, %p179
      %p181 = pneg %p180
      // Predicated region
      $region9: #{tpu_custom_call.1} parent=5 // pred_check
        _
      $region10: #{tpu_custom_call.1} parent=5 // pred_check_branch
        %183 = sbr.rel (%p180) target = $region12
      $region11: #{tpu_custom_call.1} parent=5 // pred_region
        %s184 = ssub.s32 %s18, 1
        // Predicated region
        $region13: #{tpu_custom_call.1} parent=11 // pred_check
          %p185 = pneg %p79
        $region14: #{tpu_custom_call.1} parent=11 // pred_check_branch
          %187 = sbr.rel (%p185) target = $region16
        $region15: #{tpu_custom_call.1} parent=11 // pred_region
          %s189 = ssub.s32 256, 256
          %190 = vsyncadd [#allocation6], %s189
          %s191 = sshll.u32 [#allocation5], 4
          %s192 = int_to_ptr.vmem [resolvable:$true] %s191
          %197 = dma.hbm_to_vmem [thread:$0]  %s1, 256, %s192, [#allocation6], 128, 128, 8
        $region16: #{tpu_custom_call.1} parent=11 // pred_fallthru
          _
        // Predicated region
        $region17: #{tpu_custom_call.1} parent=11 // pred_check
          %p198 = pneg %p100
        $region18: #{tpu_custom_call.1} parent=11 // pred_check_branch
          %200 = sbr.rel (%p198) target = $region20
        $region19: #{tpu_custom_call.1} parent=11 // pred_region
          _
        $region20: #{tpu_custom_call.1} parent=11 // pred_fallthru
          _
        // Predicated region
        $region21: #{tpu_custom_call.1} parent=11 // pred_check
          %p201 = pneg %p121
        $region22: #{tpu_custom_call.1} parent=11 // pred_check_branch
          %203 = sbr.rel (%p201) target = $region24
        $region23: #{tpu_custom_call.1} parent=11 // pred_region
          %s205 = ssub.s32 1024, 1024
          %206 = vsyncadd [#allocation6], %s205
          %s207 = sshll.u32 [#allocation7], 4
          %s208 = int_to_ptr.vmem [resolvable:$true] %s207
          %213 = dma.hbm_to_vmem [thread:$0]  %s3, 1024, %s208, [#allocation6], 128, 128, 8
        $region24: #{tpu_custom_call.1} parent=11 // pred_fallthru
          _
        // Predicated region
        $region25: #{tpu_custom_call.1} parent=11 // pred_check
          %p214 = pneg %p142
        $region26: #{tpu_custom_call.1} parent=11 // pred_check_branch
          %216 = sbr.rel (%p214) target = $region28
        $region27: #{tpu_custom_call.1} parent=11 // pred_region
          _
        $region28: #{tpu_custom_call.1} parent=11 // pred_fallthru
          _
      $region12: #{tpu_custom_call.1} parent=5 // pred_fallthru
        _
      %p217 = scmp.lt.s32.totalorder %s18, 2
      // Predicated region
      $region29: #{tpu_custom_call.1} parent=5 // pred_check
        %p218 = pneg %p217
      $region30: #{tpu_custom_call.1} parent=5 // pred_check_branch
        %220 = sbr.rel (%p218) target = $region32
      $region31: #{tpu_custom_call.1} parent=5 // pred_region
        // Predicated region
        $region33: #{tpu_custom_call.1} parent=31 // pred_check
          %p221 = pneg %p52
        $region34: #{tpu_custom_call.1} parent=31 // pred_check_branch
          %223 = sbr.rel (%p221) target = $region36
        $region35: #{tpu_custom_call.1} parent=31 // pred_region
          %s224 = sand.u32 %s42, 1
          %s225 = scalar_lea.sflag [#allocation3], %s224
          %s226 = sand.u32 %s42, 1
          %s227 = smul.addr %s226, 4
          %s228 = scalar_lea.vmem [#allocation2], %s227
          %s230 = ssub.s32 64, 64
          %231 = vsyncadd %s225, %s230
          %s232 = sadd.s32 %s26, %s25
          %s233 = smul.addr %s232, 64
          %s234 = scalar_lea.hbm %s0, %s233
          %s236 = sshll.u32 %s228, 4
          %s237 = int_to_ptr.vmem [resolvable:$true] %s236
          %239 = dma.hbm_to_vmem [thread:$0]  %s234, 64, %s237, %s225
        $region36: #{tpu_custom_call.1} parent=31 // pred_fallthru
          _
      $region32: #{tpu_custom_call.1} parent=5 // pred_fallthru
        _
      %p240 = scmp.le.s32.totalorder 1, %s18
      %p241 = scmp.lt.s32.totalorder %s18, 3
      %p242 = pnand %p240, %p241
      %p243 = pneg %p242
      // Predicated region
      $region37: #{tpu_custom_call.1} parent=5 // pred_check
        _
      $region38: #{tpu_custom_call.1} parent=5 // pred_check_branch
        %245 = sbr.rel (%p242) target = $region40
      $region39: #{tpu_custom_call.1} parent=5 // pred_region
        %s246 = ssub.s32 %s18, 1
        %s247 = sand.u32 %s45, 1
        %s248 = scalar_lea.sflag [#allocation3], %s247
        %s249 = sand.u32 %s45, 1
        %s250 = smul.addr %s249, 4
        %s251 = scalar_lea.vmem [#allocation2], %s250
        // Predicated region
        $region41: #{tpu_custom_call.1} parent=39 // pred_check
          %p252 = pneg %p58
        $region42: #{tpu_custom_call.1} parent=39 // pred_check_branch
          %254 = sbr.rel (%p252) target = $region44
        $region43: #{tpu_custom_call.1} parent=39 // pred_region
          %255 = dma.done %s248, 64
        $region44: #{tpu_custom_call.1} parent=39 // pred_fallthru
          _
        // Predicated region
        $region45: #{tpu_custom_call.1} parent=39 // pred_check
          %p256 = pneg %p79
        $region46: #{tpu_custom_call.1} parent=39 // pred_check_branch
          %258 = sbr.rel (%p256) target = $region48
        $region47: #{tpu_custom_call.1} parent=39 // pred_region
          %259 = dma.done [#allocation6], 256
        $region48: #{tpu_custom_call.1} parent=39 // pred_fallthru
          _
        // Predicated region
        $region49: #{tpu_custom_call.1} parent=39 // pred_check
          %p260 = pneg %p121
        $region50: #{tpu_custom_call.1} parent=39 // pred_check_branch
          %262 = sbr.rel (%p260) target = $region52
        $region51: #{tpu_custom_call.1} parent=39 // pred_region
          %263 = dma.done [#allocation6], 1024
        $region52: #{tpu_custom_call.1} parent=39 // pred_fallthru
          _
        %s264 = sand.u32 %s45, 1
        %s265 = scalar_lea.sflag [#allocation3], %s264
        %s266 = sand.u32 %s45, 1
        %s267 = smul.addr %s266, 4
        %s268 = scalar_lea.vmem [#allocation2], %s267
        %p269 = pneg %p58
        %p270 = pneg %p55
        %p271 = pneg %p79
        %p272 = pneg %p76
        %p273 = pneg %p100
        %p274 = pneg %p97
        %p275 = pneg %p121
        %p276 = pneg %p118
        %p277 = pneg %p142
        %p278 = pneg %p139
        %p279 = pneg %p170
        %p280 = pneg %p167
        %s281 = sand.u32 %s157, 1
        %s282 = scalar_lea.sflag [#allocation4], %s281
        %s283 = sand.u32 %s157, 1
        %s284 = smul.addr %s283, 4
        %s285 = scalar_lea.vmem [#allocation8], %s284
        %v286 = vld [vmem:[%s251] sm:$0xf]
        %v287 = vld [vmem:[#allocation5] sm:$0xff]
        %v288 = vld [vmem:[#allocation5 + $0x8] sm:$0xff]
        %v289 = vld [vmem:[%s2] sm:$0x1]
        %v291 = vlaneseq
        %v292 = vshrl.u32 %v291, 7
        %v293 = vsub.s32 0, %v292
        %v294 = vrot.slane %v289, %v293
        %vm296 = vcmask 130048
        %v298 = vsel %vm296, %v286, 0
        %300 = vmatprep.subr.mxu0 0.0
        %301 = vmatpush1.msra.mxu0 0.0
        %302 = vmatprep.subr.mxu0 0.0
        %303 = vmatpush1.msra.mxu0 0.0
        %304 = vmatprep.subr.mxu0 0.0
        %305 = vmatpush1.msra.mxu0 0.0
        %306 = vmatprep.subr.mxu0 0.0
        %307 = vmatpush1.msra.mxu0 0.0
        %308 = vmatprep.subr.mxu0 0.0
        %309 = vmatpush1.msra.mxu0 0.0
        %310 = vmatprep.subr.mxu0 0.0
        %311 = vmatpush1.msra.mxu0 0.0
        %312 = vmatprep.subr.mxu0 0.0
        %313 = vmatpush1.msra.mxu0 0.0
        %314 = vmatprep.subr.mxu0 0.0
        %315 = vmatpush1.msra.mxu0 0.0
        %316 = vmatprep.subr.mxu0 0.0
        %317 = vmatpush1.msra.mxu0 0.0
        %318 = vmatprep.subr.mxu0 0.0
        %319 = vmatpush1.msra.mxu0 0.0
        %320 = vmatprep.subr.mxu0 0.0
        %321 = vmatpush1.msra.mxu0 0.0
        %322 = vmatprep.subr.mxu0 0.0
        %323 = vmatpush1.msra.mxu0 0.0
        %324 = vmatprep.subr.mxu0 0.0
        %325 = vmatpush1.msra.mxu0 0.0
        %326 = vmatprep.subr.mxu0 0.0
        %327 = vmatpush1.msra.mxu0 0.0
        %328 = vmatprep.subr.mxu0 0.0
        %329 = vmatpush1.msra.mxu0 %v288
        %330 = vmatprep.subr.mxu0 0.0
        %331 = vmatpush1.msra.mxu0 %v287
        %332 = vmatprep.subr.mxu0 0.0
        %333 = vmatpush2.msra.mxu0 0.0
        %334 = vmatprep.subr.mxu0 0.0
        %335 = vmatpush2.msra.mxu0 0.0
        %336 = vmatprep.subr.mxu0 0.0
        %337 = vmatpush2.msra.mxu0 0.0
        %338 = vmatprep.subr.mxu0 0.0
        %339 = vmatpush2.msra.mxu0 0.0
        %340 = vmatprep.subr.mxu0 0.0
        %341 = vmatpush2.msra.mxu0 0.0
        %342 = vmatprep.subr.mxu0 0.0
        %343 = vmatpush2.msra.mxu0 0.0
        %344 = vmatprep.subr.mxu0 0.0
        %345 = vmatpush2.msra.mxu0 0.0
        %346 = vmatprep.subr.mxu0 0.0
        %347 = vmatpush2.msra.mxu0 0.0
        %348 = vmatprep.subr.mxu0 0.0
        %349 = vmatpush2.msra.mxu0 0.0
        %350 = vmatprep.subr.mxu0 0.0
        %351 = vmatpush2.msra.mxu0 0.0
        %352 = vmatprep.subr.mxu0 0.0
        %353 = vmatpush2.msra.mxu0 0.0
        %354 = vmatprep.subr.mxu0 0.0
        %355 = vmatpush2.msra.mxu0 0.0
        %356 = vmatprep.subr.mxu0 0.0
        %357 = vmatpush2.msra.mxu0 0.0
        %358 = vmatprep.subr.mxu0 0.0
        %359 = vmatpush2.msra.mxu0 0.0
        %360 = vmatprep.subr.mxu0 0.0
        %361 = vmatpush2.msra.mxu0 0.0
        %362 = vmatprep.subr.mxu0 0.0
        %363 = vmatpush2.msra.mxu0 0.0
        %364 = vmatprep.mubr.f32.mxu0 0.0
        %365 = vmatmul.mubr.f32.gmra.mxu0 %v298
        %v366 = vpop.f32.mrf.mxu0
        %v367 = vadd.f32 %v294, %v366
        %v368 = vpop.f32.mrf.mxu0
        %369 = vdwg.mxu0
        %v370 = vmul.f32 %v367, 0.5
        %v371 = vmul.f32 %v367, 0.70710677
        %v372 = verf.f32.pop %v371
        %v373 = vadd.f32 %v372, 1.0
        %v374 = vmul.f32 %v370, %v373
        %v375 = vld [vmem:[#allocation7] sm:$0xff]
        %v376 = vld [vmem:[#allocation7 + $0x8] sm:$0xff]
        %v377 = vld [vmem:[#allocation7 + $0x10] sm:$0xff]
        %v378 = vld [vmem:[#allocation7 + $0x18] sm:$0xff]
        %v379 = vld [vmem:[#allocation7 + $0x20] sm:$0xff]
        %v380 = vld [vmem:[#allocation7 + $0x28] sm:$0xff]
        %v381 = vld [vmem:[#allocation7 + $0x30] sm:$0xff]
        %v382 = vld [vmem:[#allocation7 + $0x38] sm:$0xff]
        %v383 = vld [vmem:[%s4] sm:$0x1]
        %v385 = vlaneseq
        %v386 = vshrl.u32 %v385, 7
        %v387 = vsub.s32 0, %v386
        %v388 = vrot.slane %v383, %v387
        %vm390 = vcmask 523264
        %v392 = vsel %vm390, %v374, 0
        %394 = vmatprep.subr.mxu0 0.0
        %395 = vmatpush1.msra.mxu0 0.0
        %396 = vmatprep.subr.mxu0 0.0
        %397 = vmatpush1.msra.mxu0 0.0
        %398 = vmatprep.subr.mxu0 0.0
        %399 = vmatpush1.msra.mxu0 0.0
        %400 = vmatprep.subr.mxu0 0.0
        %401 = vmatpush1.msra.mxu0 0.0
        %402 = vmatprep.subr.mxu0 0.0
        %403 = vmatpush1.msra.mxu0 0.0
        %404 = vmatprep.subr.mxu0 0.0
        %405 = vmatpush1.msra.mxu0 0.0
        %406 = vmatprep.subr.mxu0 0.0
        %407 = vmatpush1.msra.mxu0 0.0
        %408 = vmatprep.subr.mxu0 0.0
        %409 = vmatpush1.msra.mxu0 0.0
        %410 = vmatprep.subr.mxu0 0.0
        %411 = vmatpush1.msra.mxu0 %v382
        %412 = vmatprep.subr.mxu0 0.0
        %413 = vmatpush1.msra.mxu0 %v381
        %414 = vmatprep.subr.mxu0 0.0
        %415 = vmatpush1.msra.mxu0 %v380
        %416 = vmatprep.subr.mxu0 0.0
        %417 = vmatpush1.msra.mxu0 %v379
        %418 = vmatprep.subr.mxu0 0.0
        %419 = vmatpush1.msra.mxu0 %v378
        %420 = vmatprep.subr.mxu0 0.0
        %421 = vmatpush1.msra.mxu0 %v377
        %422 = vmatprep.subr.mxu0 0.0
        %423 = vmatpush1.msra.mxu0 %v376
        %424 = vmatprep.subr.mxu0 0.0
        %425 = vmatpush1.msra.mxu0 %v375
        %426 = vmatprep.subr.mxu0 0.0
        %427 = vmatpush2.msra.mxu0 0.0
        %428 = vmatprep.subr.mxu0 0.0
        %429 = vmatpush2.msra.mxu0 0.0
        %430 = vmatprep.subr.mxu0 0.0
        %431 = vmatpush2.msra.mxu0 0.0
        %432 = vmatprep.subr.mxu0 0.0
        %433 = vmatpush2.msra.mxu0 0.0
        %434 = vmatprep.subr.mxu0 0.0
        %435 = vmatpush2.msra.mxu0 0.0
        %436 = vmatprep.subr.mxu0 0.0
        %437 = vmatpush2.msra.mxu0 0.0
        %438 = vmatprep.subr.mxu0 0.0
        %439 = vmatpush2.msra.mxu0 0.0
        %440 = vmatprep.subr.mxu0 0.0
        %441 = vmatpush2.msra.mxu0 0.0
        %442 = vmatprep.subr.mxu0 0.0
        %443 = vmatpush2.msra.mxu0 0.0
        %444 = vmatprep.subr.mxu0 0.0
        %445 = vmatpush2.msra.mxu0 0.0
        %446 = vmatprep.subr.mxu0 0.0
        %447 = vmatpush2.msra.mxu0 0.0
        %448 = vmatprep.subr.mxu0 0.0
        %449 = vmatpush2.msra.mxu0 0.0
        %450 = vmatprep.subr.mxu0 0.0
        %451 = vmatpush2.msra.mxu0 0.0
        %452 = vmatprep.subr.mxu0 0.0
        %453 = vmatpush2.msra.mxu0 0.0
        %454 = vmatprep.subr.mxu0 0.0
        %455 = vmatpush2.msra.mxu0 0.0
        %456 = vmatprep.subr.mxu0 0.0
        %457 = vmatpush2.msra.mxu0 0.0
        %458 = vmatprep.mubr.f32.mxu0 0.0
        %459 = vmatmul.mubr.f32.gmra.mxu0 %v392
        %v460 = vpop.f32.mrf.mxu0
        %v461 = vadd.f32 %v388, %v460
        %v462 = vpop.f32.mrf.mxu0
        %463 = vdwg.mxu0
        %v464 = vmul.f32 %v461, 0.5
        %v465 = vmul.f32 %v461, 0.70710677
        %v466 = verf.f32.pop %v465
        %v467 = vadd.f32 %v466, 1.0
        %v468 = vmul.f32 %v464, %v467
        %469 = vst [vmem:[%s285] sm:$0xf] %v468
        %s470 = sand.u32 %s157, 1
        %s471 = scalar_lea.sflag [#allocation4], %s470
        %s472 = sand.u32 %s157, 1
        %s473 = smul.addr %s472, 4
        %s474 = scalar_lea.vmem [#allocation8], %s473
        // Predicated region
        $region53: #{tpu_custom_call.1} parent=39 // pred_check
          %p475 = pneg %p167
        $region54: #{tpu_custom_call.1} parent=39 // pred_check_branch
          %477 = sbr.rel (%p475) target = $region56
        $region55: #{tpu_custom_call.1} parent=39 // pred_region
          %s479 = ssub.s32 64, 64
          %480 = vsyncadd %s471, %s479
          %s481 = sadd.s32 %s28, %s27
          %s482 = smul.addr %s481, 64
          %s483 = scalar_lea.hbm %s5, %s482
          %s485 = sshll.u32 %s474, 4
          %s486 = int_to_ptr.vmem [resolvable:$true] %s485
          %488 = dma.vmem_to_hbm [thread:$0]  %s486, 64, %s483, %s471
        $region56: #{tpu_custom_call.1} parent=39 // pred_fallthru
          _
      $region40: #{tpu_custom_call.1} parent=5 // pred_fallthru
        _
      %p489 = scmp.le.s32.totalorder 2, %s18
      // Predicated region
      $region57: #{tpu_custom_call.1} parent=5 // pred_check
        %p490 = pneg %p489
      $region58: #{tpu_custom_call.1} parent=5 // pred_check_branch
        %492 = sbr.rel (%p490) target = $region60
      $region59: #{tpu_custom_call.1} parent=5 // pred_region
        %s493 = ssub.s32 %s18, 2
        // Predicated region
        $region61: #{tpu_custom_call.1} parent=59 // pred_check
          %p494 = pneg %p173
        $region62: #{tpu_custom_call.1} parent=59 // pred_check_branch
          %496 = sbr.rel (%p494) target = $region64
        $region63: #{tpu_custom_call.1} parent=59 // pred_region
          %s497 = sand.u32 %s158, 1
          %s498 = scalar_lea.sflag [#allocation4], %s497
          %s499 = sand.u32 %s158, 1
          %s500 = smul.addr %s499, 4
          %s501 = scalar_lea.vmem [#allocation8], %s500
          %502 = dma.done %s498, 64
        $region64: #{tpu_custom_call.1} parent=59 // pred_fallthru
          _
      $region60: #{tpu_custom_call.1} parent=5 // pred_fallthru
        _
    $region6: #{tpu_custom_call.1} parent=1 // loop_footer
      %s22 = sadd.s32 1, %s18
    $region7: #{tpu_custom_call.1} parent=1 // loop_footer_branch
      %17 = sbr.rel target = $region3
    $region8: #{tpu_custom_call.1} parent=1 // loop_exit
      _
    %503 = vsyncpa [#allocation3], 1
    %s504 = scalar_lea.sflag [#allocation3], 1
    %505 = vsyncpa %s504, 1
    %506 = vsyncpa [#allocation6], 1
    %507 = vsyncpa [#allocation4], 1
    %s508 = scalar_lea.sflag [#allocation4], 1
    %509 = vsyncpa %s508, 1

</llo_original>
